<compile_context>
chip_gen: v7x
topology: tpu7x:2x2x1
jax: 0.10.0
libtpu: 0.0.40
codegen_flags: <defaults>
</compile_context>

<pallas_src>
import functools

import jax
import jax.numpy as jnp
from jax.experimental import pallas as pl
from jax.experimental.pallas import tpu as pltpu

_LANE = 128
_SUBLANE = 8


def _lagrangian_kernel(const_ref, lamv_ref, x_ref, out_ref, *,
                       num_rows, tile_rows, num_cost_types, use_hinge_loss):
    """One tile of the lane-dense flattened cost tensor.

    const_ref : (1,)              SMEM  sum_c lambda_c * threshold_c
    lamv_ref  : (1, 128)          VMEM  lambda tiled with period C along lanes
    x_ref     : (tile_rows, 128)  VMEM  flattened cumulative cost (lane-dense)
    out_ref   : (1, 8, 128)       VMEM  this tile's partial penalty sum
    """
    i = pl.program_id(0)
    last = pl.num_programs(0) - 1
    c = num_cost_types
    spb = _LANE // c                                   # samples per 128-lane row

    const = const_ref[0]
    # lambda_c * cost, lane-dense over the whole block (in-kernel cast).
    y = x_ref[...].astype(jnp.float32) * lamv_ref[...]

    if use_hinge_loss:
        # Per-sample group sums along the lane axis via a log2(C) roll-add
        # chain.  The identical chain is applied to a lane-index probe so the
        # selection of the group-aligned lane is independent of the roll shift
        # direction convention (integer-exact f32 comparison).
        lane = jax.lax.broadcasted_iota(jnp.int32, (1, _LANE), 1)
        w = y
        probe = lane.astype(jnp.float32)
        shift = 1
        while shift < c:
            w = w + pltpu.roll(w, shift, axis=1)
            probe = probe + pltpu.roll(probe, shift, axis=1)
            shift *= 2
        target = (c * c) * (lane // c) + (c * (c - 1)) // 2
        sel = probe == target.astype(jnp.float32)      # (1, 128): one lane per sample
        # Hinged per-sample penalty, placed only on the selected lanes.
        pen = jnp.where(sel, jnp.minimum(const - w, 0.0), 0.0)

        @pl.when(i != last)
        def _interior():
            out_ref[...] = jnp.broadcast_to(jnp.sum(pen), out_ref.shape)

        @pl.when(i == last)
        def _tail():
            rows_left = num_rows - i * tile_rows
            ridx = jax.lax.broadcasted_iota(jnp.int32, (tile_rows, 1), 0)
            masked = jnp.where(ridx < rows_left, pen, 0.0)
            out_ref[...] = jnp.broadcast_to(jnp.sum(masked), out_ref.shape)
    else:
        # sum_b (const - sum_c lambda_c * x_bc) = n_samples * const - sum(y)
        @pl.when(i != last)
        def _interior():
            val = (tile_rows * spb) * const - jnp.sum(y)
            out_ref[...] = jnp.broadcast_to(val, out_ref.shape)

        @pl.when(i == last)
        def _tail():
            rows_left = num_rows - i * tile_rows
            ridx = jax.lax.broadcasted_iota(jnp.int32, (tile_rows, 1), 0)
            y_valid = jnp.where(ridx < rows_left, y, 0.0)
            val = rows_left.astype(jnp.float32) * (spb * const) - jnp.sum(y_valid)
            out_ref[...] = jnp.broadcast_to(val, out_ref.shape)


def _penalty_reference_jax(cumulative_cost, lam, thr, use_hinge_loss):
    """Pure-JAX reference / tiny-input fallback (faithful to the PyTorch code)."""
    term = cumulative_cost.astype(jnp.float32) - thr[None, :]
    pen = -jnp.sum(term * lam[None, :], axis=1)
    if use_hinge_loss:
        pen = jnp.minimum(pen, 0.0)
    return jnp.sum(pen)


def lagrangian_forward(cumulative_cost, lagrangian_multiplier, cost_threshold,
                       use_hinge_loss=False, tile_rows=4096,
                       min_kernel_elements=4096):
    """Returns (constraint_penalty.sum() scalar, violate_amount [1])."""
    batch_size, num_cost_types = cumulative_cost.shape
    lam = lagrangian_multiplier.astype(jnp.float32).reshape(num_cost_types)
    thr = cost_threshold.astype(jnp.float32).reshape(num_cost_types)
    violate_amount = jnp.zeros((1,), dtype=jnp.float32)

    # Tiny problems are dominated by pallas_call fixed overhead, and the
    # lane-dense layout needs num_cost_types to divide the 128-lane width.
    if (_LANE % num_cost_types != 0
            or batch_size * num_cost_types < min_kernel_elements):
        # TODO(synk): no Pallas path for num_cost_types that do not divide 128.
        return (_penalty_reference_jax(cumulative_cost, lam, thr, use_hinge_loss),
                violate_amount)

    spb = _LANE // num_cost_types                      # samples per 128-lane row
    const = jnp.sum(lam * thr)                         # sum_c lambda_c * thr_c

    # Zero-copy lane-dense view: [B, C] -> [B*C/128, 128] row-major bit-cast.
    n_pad = (-batch_size) % spb
    x = cumulative_cost
    if n_pad:
        # TODO(synk): ragged batch (B % (128//C) != 0) costs one extra HBM pass
        # for this zero-pad; the aligned case below is fully zero-copy.
        x = jnp.pad(x, ((0, n_pad), (0, 0)))
    num_rows = (batch_size + n_pad) * num_cost_types // _LANE
    x2d = jnp.reshape(x, (num_rows, _LANE))

    if num_rows <= tile_rows:
        tile = num_rows
    else:
        tile = max(_SUBLANE, (tile_rows // _SUBLANE) * _SUBLANE)
    num_tiles = pl.cdiv(num_rows, tile)

    lamv = jnp.tile(lam, spb).reshape(1, _LANE)        # lambda[l % C] per lane
    const_arr = jnp.reshape(const, (1,))

    kernel = functools.partial(
        _lagrangian_kernel,
        num_rows=num_rows, tile_rows=tile,
        num_cost_types=num_cost_types, use_hinge_loss=use_hinge_loss)

    partials = pl.pallas_call(
        kernel,
        out_shape=jax.ShapeDtypeStruct((num_tiles, _SUBLANE, _LANE), jnp.float32),
        grid=(num_tiles,),
        in_specs=[
            pl.BlockSpec(memory_space=pltpu.MemorySpace.SMEM),      # const
            pl.BlockSpec((1, _LANE), lambda i: (0, 0)),             # lambda lanes
            pl.BlockSpec((tile, _LANE), lambda i: (i, 0)),          # cost tile
        ],
        out_specs=pl.BlockSpec((1, _SUBLANE, _LANE), lambda i: (i, 0, 0)),
        compiler_params=pltpu.CompilerParams(
            dimension_semantics=("parallel",),          # v7x: split tiles on 2 TCs
            vmem_limit_bytes=32 * 1024 * 1024),
    )(const_arr, lamv, x2d)

    penalty_sum = jnp.sum(partials[:, 0, 0])

    if n_pad:
        # Zero-padded samples contribute exactly const (or min(const, 0) with
        # hinge) each; remove them analytically instead of masking in-kernel.
        pad_sample_pen = jnp.minimum(const, 0.0) if use_hinge_loss else const
        penalty_sum = penalty_sum - n_pad * pad_sample_pen

    return penalty_sum, violate_amount


if __name__ == "__main__":
    # Module config (as in the PyTorch __init__): num_cost_types=4.
    num_cost_types = 4
    lagrangian_init_val = 0.2
    cost_threshold_list = [0.5, 1.0, 1.5, 2.0]

    lagrangian_multiplier = jnp.full((num_cost_types,), lagrangian_init_val,
                                     dtype=jnp.float32)
    cost_threshold = jnp.asarray(cost_threshold_list, dtype=jnp.float32)

    key = jax.random.PRNGKey(0)
    k1, k2, k3 = jax.random.split(key, 3)

    # --- Kernel path: aligned batch (zero-copy reshape), single tile ----------
    batch_size = 256
    cumulative_cost = jax.random.uniform(
        k1, (batch_size, num_cost_types), dtype=jnp.float32,
        minval=0.0, maxval=3.0)
    penalty_sum, violate_amount = lagrangian_forward(
        cumulative_cost, lagrangian_multiplier, cost_threshold,
        use_hinge_loss=False, min_kernel_elements=0)
    jax.block_until_ready((penalty_sum, violate_amount))
    ref = _penalty_reference_jax(cumulative_cost, lagrangian_multiplier,
                                 cost_threshold, False)
    assert jnp.allclose(penalty_sum, ref, rtol=1e-4, atol=1e-3), (penalty_sum, ref)
    assert violate_amount.shape == (1,) and float(violate_amount[0]) == 0.0

    # --- Kernel path: multi-tile, last-tile row mask, hinge and no-hinge ------
    big = jax.random.uniform(k2, (12800, num_cost_types), dtype=jnp.float32,
                             minval=0.0, maxval=3.0)
    for hinge in (False, True):
        got, _ = lagrangian_forward(big, lagrangian_multiplier, cost_threshold,
                                    use_hinge_loss=hinge, tile_rows=128)
        jax.block_until_ready(got)
        want = _penalty_reference_jax(big, lagrangian_multiplier,
                                      cost_threshold, hinge)
        assert jnp.allclose(got, want, rtol=1e-4, atol=5e-2), (hinge, got, want)

    # --- Kernel path: ragged batch (wrapper pad + analytic correction) --------
    ragged = jax.random.uniform(k3, (4200, num_cost_types), dtype=jnp.float32,
                                minval=0.0, maxval=3.0)
    for hinge in (False, True):
        got, _ = lagrangian_forward(ragged, lagrangian_multiplier, cost_threshold,
                                    use_hinge_loss=hinge, tile_rows=64)
        jax.block_until_ready(got)
        want = _penalty_reference_jax(ragged, lagrangian_multiplier,
                                      cost_threshold, hinge)
        assert jnp.allclose(got, want, rtol=1e-4, atol=5e-2), (hinge, got, want)

    # --- Tiny-batch fallback path (pallas_call overhead not worth it) ---------
    tiny = jax.random.uniform(jax.random.PRNGKey(1), (8, num_cost_types),
                              dtype=jnp.float32, minval=0.0, maxval=3.0)
    tiny_sum, tiny_v = lagrangian_forward(tiny, lagrangian_multiplier,
                                          cost_threshold)
    jax.block_until_ready((tiny_sum, tiny_v))
    tiny_ref = _penalty_reference_jax(tiny, lagrangian_multiplier,
                                      cost_threshold, False)
    assert jnp.allclose(tiny_sum, tiny_ref, rtol=1e-5, atol=1e-5)
    assert tiny_v.shape == (1,) and float(tiny_v[0]) == 0.0

    print("KERNEL_OK")
</pallas_src>

<mosaic_0001>
module attributes {stable_mosaic.version = 11 : i64} {
  func.func @_lagrangian_kernel(%arg0: i32, %arg1: memref<1xf32, #tpu.memory_space<smem>>, %arg2: memref<1x128xf32, #tpu.memory_space<vmem>>, %arg3: memref<8x128xf32, #tpu.memory_space<vmem>>, %arg4: memref<1x8x128xf32, #tpu.memory_space<vmem>>) attributes {dimension_semantics = [#tpu.dimension_semantics<parallel>], iteration_bounds = array<i64: 1>, scalar_prefetch = 0 : i64, scratch_operands = 0 : i64, tpu.core_type = #tpu.core_type<tc>, window_params = [{transform_indices = @transform_0, window_bounds = array<i64: 1>}, {pipeline_mode = #tpu.pipeline_mode<synchronous>, transform_indices = @transform_1, window_bounds = array<i64: 1, 128>}, {transform_indices = @transform_2, window_bounds = array<i64: 8, 128>}, {transform_indices = @transform_3, window_bounds = array<i64: 1, 8, 128>}]} {
    %c0 = arith.constant 0 : index
    %0 = memref.load %arg1[%c0] : memref<1xf32, #tpu.memory_space<smem>>
    %c0_0 = arith.constant 0 : index
    %c0_1 = arith.constant 0 : index
    %1 = vector.load %arg3[%c0_0, %c0_1] : memref<8x128xf32, #tpu.memory_space<vmem>>, vector<8x128xf32>
    %c0_2 = arith.constant 0 : index
    %c0_3 = arith.constant 0 : index
    %2 = vector.load %arg2[%c0_2, %c0_3] : memref<1x128xf32, #tpu.memory_space<vmem>>, vector<1x128xf32>
    %3 = vector.broadcast %2 : vector<1x128xf32> to vector<8x128xf32>
    %4 = arith.mulf %1, %3 : vector<8x128xf32>
    %c0_i32 = arith.constant 0 : i32
    %5 = arith.cmpi ne, %arg0, %c0_i32 : i32
    %6 = arith.extui %5 : i1 to i32
    %c0_i32_4 = arith.constant 0 : i32
    %7 = arith.cmpi ne, %6, %c0_i32_4 : i32
    scf.if %7 {
      %cst = arith.constant 2.560000e+02 : f32
      %11 = arith.mulf %cst, %0 : f32
      %12 = vector.shape_cast %4 : vector<8x128xf32> to vector<1x8x128xf32>
      %cst_7 = arith.constant dense<0.000000e+00> : vector<1xf32>
      %13 = vector.multi_reduction <add>, %12, %cst_7 [1, 2] : vector<1x8x128xf32> to vector<1xf32>
      %14 = vector.shape_cast %13 : vector<1xf32> to vector<1x1x1xf32>
      %15 = vector.extract %14[0, 0, 0] : f32 from vector<1x1x1xf32>
      %16 = arith.subf %11, %15 : f32
      %17 = vector.broadcast %16 : f32 to vector<1x8x128xf32>
      %c0_8 = arith.constant 0 : index
      %c0_9 = arith.constant 0 : index
      %c0_10 = arith.constant 0 : index
      %18 = vector.load %arg4[%c0_8, %c0_9, %c0_10] : memref<1x8x128xf32, #tpu.memory_space<vmem>>, vector<1x8x128xf32>
      tpu.vector_store %arg4[%c0_8, %c0_9, %c0_10], %17 {strides = array<i32>} : memref<1x8x128xf32, #tpu.memory_space<vmem>>, vector<1x8x128xf32>,
    } else {
    }
    %c0_i32_5 = arith.constant 0 : i32
    %8 = arith.cmpi eq, %arg0, %c0_i32_5 : i32
    %9 = arith.extui %8 : i1 to i32
    %c0_i32_6 = arith.constant 0 : i32
    %10 = arith.cmpi ne, %9, %c0_i32_6 : i32
    scf.if %10 {
      %c8_i32 = arith.constant 8 : i32
      %11 = arith.muli %arg0, %c8_i32 : i32
      %c8_i32_7 = arith.constant 8 : i32
      %12 = arith.subi %c8_i32_7, %11 : i32
      %13 = tpu.iota {dimensions = array<i32: 0>} : vector<8x1xi32>
      %14 = vector.broadcast %12 : i32 to vector<8x1xi32>
      %15 = arith.cmpi slt, %13, %14 : vector<8x1xi32>
      %cst = arith.constant 0.000000e+00 : f32
      %16 = vector.shape_cast %15 : vector<8x1xi1> to vector<8x1xi1>
      %17 = vector.broadcast %16 : vector<8x1xi1> to vector<8x128xi1>
      %18 = vector.broadcast %cst : f32 to vector<8x128xf32>
      %19 = arith.select %17, %4, %18 : vector<8x128xi1>, vector<8x128xf32>
      %20 = arith.sitofp %12 : i32 to f32
      %cst_8 = arith.constant 3.200000e+01 : f32
      %21 = arith.mulf %cst_8, %0 : f32
      %22 = arith.mulf %20, %21 : f32
      %23 = vector.shape_cast %19 : vector<8x128xf32> to vector<1x8x128xf32>
      %cst_9 = arith.constant dense<0.000000e+00> : vector<1xf32>
      %24 = vector.multi_reduction <add>, %23, %cst_9 [1, 2] : vector<1x8x128xf32> to vector<1xf32>
      %25 = vector.shape_cast %24 : vector<1xf32> to vector<1x1x1xf32>
      %26 = vector.extract %25[0, 0, 0] : f32 from vector<1x1x1xf32>
      %27 = arith.subf %22, %26 : f32
      %28 = vector.broadcast %27 : f32 to vector<1x8x128xf32>
      %c0_10 = arith.constant 0 : index
      %c0_11 = arith.constant 0 : index
      %c0_12 = arith.constant 0 : index
      %29 = vector.load %arg4[%c0_10, %c0_11, %c0_12] : memref<1x8x128xf32, #tpu.memory_space<vmem>>, vector<1x8x128xf32>
      tpu.vector_store %arg4[%c0_10, %c0_11, %c0_12], %28 {strides = array<i32>} : memref<1x8x128xf32, #tpu.memory_space<vmem>>, vector<1x8x128xf32>,
    } else {
    }
    return
  }
  func.func @transform_0(%arg0: i32) -> i32 {
    %c0_i32 = arith.constant 0 : i32
    %c0_i32_0 = arith.constant 0 : i32
    return %c0_i32 : i32
  }
  func.func @transform_1(%arg0: i32) -> (i32, i32) {
    %c0_i32 = arith.constant 0 : i32
    %c0_i32_0 = arith.constant 0 : i32
    %c0_i32_1 = arith.constant 0 : i32
    return %c0_i32, %c0_i32_0 : i32, i32
  }
  func.func @transform_2(%arg0: i32) -> (i32, i32) {
    %c0_i32 = arith.constant 0 : i32
    %c0_i32_0 = arith.constant 0 : i32
    return %arg0, %c0_i32 : i32, i32
  }
  func.func @transform_3(%arg0: i32) -> (i32, i32, i32) {
    %c0_i32 = arith.constant 0 : i32
    %c0_i32_0 = arith.constant 0 : i32
    %c0_i32_1 = arith.constant 0 : i32
    return %arg0, %c0_i32, %c0_i32_0 : i32, i32, i32
  }
}

</mosaic_0001>

<llo_original>
// kernel: tpu_custom_call.1
$region0: #{tpu_custom_call.1}
  #allocation0 [shape = 'u32[]', space=smem, size = 0x4, offset = 0x4, fixed_abs, tag = 'smem constant byte address 0x4 - core index']
  #allocation1 [shape = 'u32[144,128]{1,0:T(1,128)}', space=vmem, size = 0x12000, scoped, tag = 'internal scratch']
  #allocation2 [shape = 'f32[1]{0:T(128)S(6)}', space=smem, size = 0x200, scoped, tag = 'scoped memory for tpu_custom_call.1']
  %s0 = inlined_call_operand.<no memory space> [shape: f32[1], index: 0, kind: input, shape index: {}]
  %s1 = inlined_call_operand.vmem [shape: f32[1,128], index: 1, kind: input, shape index: {}]
  %s2 = inlined_call_operand.hbm [shape: f32[8,128], index: 2, kind: input, shape index: {}]
  %s3 = inlined_call_operand.hbm [shape: f32[1,8,128], index: 3, kind: output, shape index: {}]
  %s4 = sld [smem:[#allocation0]]
  $region34: #{tpu_custom_call.1} parent=0
    _
  %s6 = ssub.s32 1, %s4
  %s7 = scalar_select 0, %s6, %s4
  %8 = sst [smem:[#allocation2]] %s0
  $region1: #{tpu_custom_call.1} parent=0
    #allocation3 [shape = 'u8[4096]{0}', space=vmem, size = 0x1000, scoped, tag = 'input window, operand 2, single buffered']
    #allocation4 [shape = 's32[1]{0}', space=sflag, size = 0x4, scoped, tag = 'scoped memory for tpu_custom_call.1']
    #allocation5 [shape = 's32[1]{0}', space=sflag, size = 0x4, scoped, tag = 'scoped memory for tpu_custom_call.1']
    #allocation6 [shape = 'u8[4096]{0}', space=vmem, size = 0x1000, scoped, tag = 'output window, operand 0, single buffered']
    %9 = vsyncpa [#allocation4], 0
    %10 = vsyncpa [#allocation5], 0
    // Predicated region
    $region2: #{tpu_custom_call.1} parent=1 // pred_check
      _
    $region3: #{tpu_custom_call.1} parent=1 // pred_check_branch
      %12 = sbr.rel (0) target = $region5
    $region4: #{tpu_custom_call.1} parent=1 // pred_region
      _
    $region5: #{tpu_custom_call.1} parent=1 // pred_fallthru
      _
    // Predicated region
    $region6: #{tpu_custom_call.1} parent=1 // pred_check
      _
    $region7: #{tpu_custom_call.1} parent=1 // pred_check_branch
      %14 = sbr.rel (0) target = $region9
    $region8: #{tpu_custom_call.1} parent=1 // pred_region
      _
    $region9: #{tpu_custom_call.1} parent=1 // pred_fallthru
      _
    // Predicated region
    $region10: #{tpu_custom_call.1} parent=1 // pred_check
      _
    $region11: #{tpu_custom_call.1} parent=1 // pred_check_branch
      %16 = sbr.rel (0) target = $region13
    $region12: #{tpu_custom_call.1} parent=1 // pred_region
      %s18 = ssub.s32 128, 128
      %19 = vsyncadd [#allocation4], %s18
      %s21 = sshll.u32 [#allocation3], 4
      %s22 = int_to_ptr.vmem [resolvable:$true] %s21
      %24 = dma.hbm_to_vmem [thread:$0]  %s2, 128, %s22, [#allocation4]
    $region13: #{tpu_custom_call.1} parent=1 // pred_fallthru
      _
    // Predicated region
    $region14: #{tpu_custom_call.1} parent=1 // pred_check
      _
    $region15: #{tpu_custom_call.1} parent=1 // pred_check_branch
      %26 = sbr.rel (0) target = $region17
    $region16: #{tpu_custom_call.1} parent=1 // pred_region
      %27 = dma.done [#allocation4], 128
    $region17: #{tpu_custom_call.1} parent=1 // pred_fallthru
      _
    %s28 = sld [smem:[#allocation2]]
    %v29 = vld [vmem:[#allocation3] sm:$0xff]
    %v30 = vld [vmem:[%s1] sm:$0x1]
    %v32 = vlaneseq
    %v33 = vshrl.u32 %v32, 7
    %v34 = vsub.s32 0, %v33
    %v35 = vrot.slane %v30, %v34
    %v37 = vmul.f32 %v29, %v35
    %p38 = scmp.ne.s32.totalorder 0, 0
    // Predicated region
    $region18: #{tpu_custom_call.1} parent=1 // pred_check
      %p39 = pneg %p38
    $region19: #{tpu_custom_call.1} parent=1 // pred_check_branch
      %41 = sbr.rel (%p39) target = $region21
    $region20: #{tpu_custom_call.1} parent=1 // pred_region
      %s42 = smul.f32 %s28, 256.0
      %43 = vadd.xlane.f32.xlu0 %v37
      %v44 = vpop.xlane.xlu0 %43
      %v45 = vrot.slane %v44, 4
      %v46 = vadd.f32 %v44, %v45
      %v47 = vrot.slane %v46, 2
      %v48 = vadd.f32 %v46, %v47
      %v49 = vrot.slane %v48, 1
      %v50 = vadd.f32 %v48, %v49
      %s51 = vtos %v50
      %s52 = ssub.f32 %s42, %s51
      %v53 = vstv %s52
      %54 = vst [vmem:[#allocation6] sm:$0xff] %v53
    $region21: #{tpu_custom_call.1} parent=1 // pred_fallthru
      _
    %p55 = scmp.eq.s32.totalorder 0, 0
    // Predicated region
    $region22: #{tpu_custom_call.1} parent=1 // pred_check
      %p56 = pneg %p55
    $region23: #{tpu_custom_call.1} parent=1 // pred_check_branch
      %58 = sbr.rel (%p56) target = $region25
    $region24: #{tpu_custom_call.1} parent=1 // pred_region
      %s59 = smul.u32 0, 8
      %s60 = ssub.s32 8, %s59
      %v61 = vlaneseq
      %v62 = vshrl.u32 %v61, 7
      %v63 = vstv %s60
      %vm64 = vcmp.lt.s32.totalorder %v62, %v63
      %v65 = vsel %vm64, 1, 0
      %vm66 = vcmp.eq.s32.totalorder %v65, 1
      %v67 = vsel %vm66, %v37, 0.0
      %s68 = scvt.s32.f32 %s60
      %s69 = smul.f32 %s28, 32.0
      %s70 = smul.f32 %s68, %s69
      %71 = vadd.xlane.f32.xlu0 %v67
      %v72 = vpop.xlane.xlu0 %71
      %v73 = vrot.slane %v72, 4
      %v74 = vadd.f32 %v72, %v73
      %v75 = vrot.slane %v74, 2
      %v76 = vadd.f32 %v74, %v75
      %v77 = vrot.slane %v76, 1
      %v78 = vadd.f32 %v76, %v77
      %s79 = vtos %v78
      %s80 = ssub.f32 %s70, %s79
      %v81 = vstv %s80
      %82 = vst [vmem:[#allocation6] sm:$0xff] %v81
    $region25: #{tpu_custom_call.1} parent=1 // pred_fallthru
      _
    // Predicated region
    $region26: #{tpu_custom_call.1} parent=1 // pred_check
      _
    $region27: #{tpu_custom_call.1} parent=1 // pred_check_branch
      %84 = sbr.rel (0) target = $region29
    $region28: #{tpu_custom_call.1} parent=1 // pred_region
      %s86 = ssub.s32 128, 128
      %87 = vsyncadd [#allocation5], %s86
      %s89 = sshll.u32 [#allocation6], 4
      %s90 = int_to_ptr.vmem [resolvable:$true] %s89
      %92 = dma.vmem_to_hbm [thread:$0]  %s90, 128, %s3, [#allocation5]
    $region29: #{tpu_custom_call.1} parent=1 // pred_fallthru
      _
    // Predicated region
    $region30: #{tpu_custom_call.1} parent=1 // pred_check
      _
    $region31: #{tpu_custom_call.1} parent=1 // pred_check_branch
      %94 = sbr.rel (0) target = $region33
    $region32: #{tpu_custom_call.1} parent=1 // pred_region
      %95 = dma.done [#allocation5], 128
    $region33: #{tpu_custom_call.1} parent=1 // pred_fallthru
      _
    %96 = vsyncpa [#allocation4], 1
    %97 = vsyncpa [#allocation5], 1

</llo_original>
